<compile_context>
chip_gen: v5e
topology: v5e:2x2
jax: 0.10.0
libtpu: 0.0.40
codegen_flags: <defaults>
</compile_context>

<pallas_src>
import functools

import jax
import jax.numpy as jnp
from jax.experimental import pallas as pl
from jax.experimental.pallas import tpu as pltpu

_LANE = 128          # lane width; output padded to a multiple of this
_SUBLANE_BF16 = 16   # bf16 sublane packing granule
_M_GRANULE = 256     # MXU M on v6e/v7x (also a multiple of v5e's 128)


def _round_up(x, m):
    return (x + m - 1) // m * m


# --------------------------------------------------------------------------- #
# Kernel
# --------------------------------------------------------------------------- #
def _mlp_kernel(x_ref, w1_ref, b1_ref, w2_ref, b2_ref, o_ref):
    # In-kernel cast: x is DMA'd in its native dtype (4B/elt for f32) instead of
    # paying a separate wrapper cast pass (4B read + 2B write + 2B re-read).
    x = x_ref[...].astype(w1_ref.dtype)
    # (bm, D_in) @ (D_in, H) on the MXU, bf16 inputs, f32 accumulation.
    h = jnp.dot(x, w1_ref[...], preferred_element_type=jnp.float32)
    h = jnp.maximum(h + b1_ref[...], 0.0)                   # bias + ReLU in f32 (VPU)
    # (bm, H) @ (H, E_pad) on the MXU, f32 accumulation.
    out = jnp.dot(h.astype(w2_ref.dtype), w2_ref[...],
                  preferred_element_type=jnp.float32)
    o_ref[...] = (out + b2_ref[...]).astype(o_ref.dtype)    # lane-dense store


# --------------------------------------------------------------------------- #
# Static-config helpers (plain Python, run outside the jitted core)
# --------------------------------------------------------------------------- #
def _choose_bm(B: int, block_m: int) -> int:
    """Batch-tile size: >=16 rows (bf16 sublane granule), 128/256-aligned once
    the batch is large, and an even/balanced grid-step count where possible so
    v7x's two TensorCores share the "parallel" axis evenly."""
    if B <= _M_GRANULE:
        return max(_SUBLANE_BF16, _round_up(B, _SUBLANE_BF16))   # single tile
    if B <= 2 * block_m:
        return _round_up(pl.cdiv(B, 2), _LANE)                   # two balanced tiles
    bm = _round_up(block_m, _M_GRANULE)
    steps = pl.cdiv(B, bm)
    if steps % 2:                                                # prefer an even step count
        bm = _round_up(pl.cdiv(B, steps + 1), _M_GRANULE)
    return bm


def _vmem_limit_bytes(bm, d_in, h, e_pad, x_bytes, w_bytes, out_bytes,
                      single_buffer):
    w_copies = 1 if single_buffer else 2
    needed = (w_copies * ((d_in * h + h * e_pad) * w_bytes + (h + e_pad) * 4)
              + 2 * bm * d_in * x_bytes        # streamed x tiles (double-buffered)
              + 2 * bm * e_pad * out_bytes     # streamed out tiles (double-buffered)
              + bm * d_in * w_bytes            # in-kernel bf16 copy of x
              + bm * (h + e_pad) * 4)          # f32 h and pre-cast-out intermediates
    try:
        phys = pltpu.get_tpu_info().vmem_capacity_bytes
    except Exception:
        phys = 64 << 20                        # conservative (v7x-sized) fallback
    cap = phys - max(12 << 20, phys // 8)      # headroom: ~52 MiB on v7x, ~112 MiB on v5e/v6e
    return int(min(cap, max(32 << 20, needed + (8 << 20))))


@functools.lru_cache(maxsize=1)
def _single_buffer_supported() -> bool:
    """Probe once whether BlockSpec(pipeline_mode=pl.Buffered(1)) lowers and runs
    on this JAX/TPU. Used to single-buffer the VMEM-resident weights (their
    index_maps are constant, so a second pipeline buffer is pure VMEM waste).
    Falls back to default double-buffering if unsupported."""
    try:
        def copy_k(x_ref, o_ref):
            o_ref[...] = x_ref[...]

        f = pl.pallas_call(
            copy_k,
            out_shape=jax.ShapeDtypeStruct((16, 128), jnp.float32),
            grid=(2,),
            in_specs=[pl.BlockSpec((8, 128), lambda i: (0, 0),
                                   pipeline_mode=pl.Buffered(1))],
            out_specs=pl.BlockSpec((8, 128), lambda i: (i, 0)),
        )
        jax.block_until_ready(f(jnp.zeros((8, 128), jnp.float32)))
        return True
    except Exception:
        return False


# --------------------------------------------------------------------------- #
# Jitted core
# --------------------------------------------------------------------------- #
@functools.partial(
    jax.jit,
    static_argnames=("bm", "out_dim", "out_dtype", "vmem_limit", "single_buffer"))
def _mlp_forward(x, w1, b1, w2, b2, *, bm, out_dim, out_dtype, vmem_limit,
                 single_buffer):
    batch_shape = x.shape[:-1]
    d_in = x.shape[-1]
    x2 = x.reshape(-1, d_in)
    B = x2.shape[0]
    H = w1.shape[1]
    E_pad = w2.shape[1]

    # Only batches smaller than one tile get zero-padded; larger ragged batches
    # rely on the masked partial last block (row-wise op => OOB garbage only
    # reaches OOB rows whose stores are masked), saving a full pad pass over x.
    B_pad = max(B, bm)
    if B_pad != B:
        x2 = jnp.pad(x2, ((0, B_pad - B), (0, 0)))
    grid = (pl.cdiv(B_pad, bm),)

    if single_buffer:
        def resident(shape):
            # Constant index_map => fetched once; one pipeline buffer halves
            # the resident-weight VMEM footprint.
            return pl.BlockSpec(shape, lambda i: (0, 0),
                                pipeline_mode=pl.Buffered(1))
    else:
        def resident(shape):
            return pl.BlockSpec(shape, lambda i: (0, 0))

    out = pl.pallas_call(
        _mlp_kernel,
        out_shape=jax.ShapeDtypeStruct((B_pad, E_pad), out_dtype),
        grid_spec=pltpu.PrefetchScalarGridSpec(
            num_scalar_prefetch=0,
            grid=grid,
            in_specs=[
                pl.BlockSpec((bm, d_in), lambda i: (i, 0)),   # x tile (streamed, native dtype)
                resident((d_in, H)),                          # W1 (VMEM resident)
                resident((1, H)),                             # b1
                resident((H, E_pad)),                         # W2 (VMEM resident)
                resident((1, E_pad)),                         # b2
            ],
            out_specs=pl.BlockSpec((bm, E_pad), lambda i: (i, 0)),
        ),
        compiler_params=pltpu.CompilerParams(
            dimension_semantics=("parallel",),
            vmem_limit_bytes=vmem_limit),
    )(x2, w1, b1, w2, b2)
    # TODO(synk): for very large D_in/H/E add K/N grid axes + a VMEM f32
    # accumulator instead of whole-weight residency (v7x has only 64 MiB VMEM).

    width = E_pad if out_dim is None else out_dim
    if B_pad != B or width != E_pad:
        out = out[:B, :width]
    return out.reshape(batch_shape + (width,))


# --------------------------------------------------------------------------- #
# Public API
# --------------------------------------------------------------------------- #
def prepare_mlp_params(w1, b1, w2, b2, compute_dtype=jnp.bfloat16):
    """One-time weight prep (hoisted out of the per-call path).

    Casts weights to the MXU compute dtype, zero-pads the embedding dim to a
    multiple of 128 (lane-dense, unmasked stores) and reshapes the biases to
    f32 (1, N) rows. Doing this per call would re-stream the weights through
    HBM on every invocation."""
    H = w1.shape[1]
    E = w2.shape[1]
    E_pad = _round_up(E, _LANE)
    w1_c = jnp.asarray(w1).astype(compute_dtype)
    w2_c = jnp.asarray(w2)
    b2_c = jnp.asarray(b2)
    if E_pad != E:
        w2_c = jnp.pad(w2_c, ((0, 0), (0, E_pad - E)))
        b2_c = jnp.pad(b2_c, ((0, E_pad - E),))
    w2_c = w2_c.astype(compute_dtype)
    b1_2d = jnp.asarray(b1).astype(jnp.float32).reshape(1, H)
    b2_2d = b2_c.astype(jnp.float32).reshape(1, E_pad)
    return w1_c, b1_2d, w2_c, b2_2d


def mlp_embedding(x, params, *, out_dim=None, block_m=1024, out_dtype=None):
    """relu(x @ W1 + b1) @ W2 + b2 with params from prepare_mlp_params.

    out_dim=None returns the lane-padded (.., round_up(E,128)) embedding with no
    post-kernel slice copy; pass the true embedding_dim for exact PyTorch
    shapes. out_dtype defaults to x.dtype (bf16 halves the HBM writeback, which
    dominates on v5e's single store slot)."""
    w1_c, b1_2d, w2_c, b2_2d = params
    d_in = x.shape[-1]
    H = w1_c.shape[1]
    E_pad = w2_c.shape[1]
    B = 1
    for d in x.shape[:-1]:
        B *= int(d)
    out_dt = jnp.dtype(out_dtype if out_dtype is not None else x.dtype)

    bm = _choose_bm(B, block_m)
    single_buffer = _single_buffer_supported()
    vmem_limit = _vmem_limit_bytes(
        bm, d_in, H, E_pad,
        x_bytes=jnp.dtype(x.dtype).itemsize,
        w_bytes=jnp.dtype(w1_c.dtype).itemsize,
        out_bytes=out_dt.itemsize,
        single_buffer=single_buffer)

    return _mlp_forward(x, w1_c, b1_2d, w2_c, b2_2d, bm=bm, out_dim=out_dim,
                        out_dtype=out_dt, vmem_limit=vmem_limit,
                        single_buffer=single_buffer)


class MLPEmbedding:
    """Pallas-TPU port of the PyTorch MLPEmbedding module (weights prepped once)."""

    def __init__(self, w1, b1, w2, b2, *, compute_dtype=jnp.bfloat16):
        self.embedding_dim = int(w2.shape[1])
        self.params = prepare_mlp_params(w1, b1, w2, b2, compute_dtype)

    def __call__(self, x, *, block_m=1024, out_dtype=None, padded_output=False):
        return mlp_embedding(
            x, self.params,
            out_dim=None if padded_output else self.embedding_dim,
            block_m=block_m, out_dtype=out_dtype)


def init_mlp_params(key, input_dim, embedding_dim, hidden_dim=128,
                    dtype=jnp.float32):
    """Deterministic init mirroring nn.Linear's U(-1/sqrt(fan_in), +1/sqrt(fan_in))."""
    k1, k2, k3, k4 = jax.random.split(key, 4)
    bound1 = 1.0 / (input_dim ** 0.5)
    bound2 = 1.0 / (hidden_dim ** 0.5)
    w1 = jax.random.uniform(k1, (input_dim, hidden_dim), dtype, -bound1, bound1)
    b1 = jax.random.uniform(k2, (hidden_dim,), dtype, -bound1, bound1)
    w2 = jax.random.uniform(k3, (hidden_dim, embedding_dim), dtype, -bound2, bound2)
    b2 = jax.random.uniform(k4, (embedding_dim,), dtype, -bound2, bound2)
    return w1, b1, w2, b2


def _reference(x, w1, b1, w2, b2, compute_dtype=jnp.bfloat16):
    """Pure-JAX reference matching the kernel's bf16-matmul / f32-accum math."""
    h = jnp.dot(x.astype(compute_dtype), w1.astype(compute_dtype),
                preferred_element_type=jnp.float32) + b1.astype(jnp.float32)
    h = jnp.maximum(h, 0.0)
    out = jnp.dot(h.astype(compute_dtype), w2.astype(compute_dtype),
                  preferred_element_type=jnp.float32) + b2.astype(jnp.float32)
    return out.astype(x.dtype)


if __name__ == "__main__":
    key = jax.random.PRNGKey(0)
    kx, kp, kx2, kx3 = jax.random.split(key, 4)

    input_dim, hidden_dim, embedding_dim = 32, 128, 64
    w1, b1, w2, b2 = init_mlp_params(kp, input_dim, embedding_dim, hidden_dim)
    model = MLPEmbedding(w1, b1, w2, b2)

    # Case 1: nominal small batch (single padded tile).
    x = jax.random.normal(kx, (8, input_dim), jnp.float32)
    out = jax.block_until_ready(model(x))
    assert out.shape == (8, embedding_dim)
    assert jnp.allclose(out, _reference(x, w1, b1, w2, b2), atol=1e-3, rtol=1e-3), \
        "mismatch vs bf16-matched reference"

    # Case 2: ragged batch below one tile (<=15-row pad path).
    x2 = jax.random.normal(kx2, (13, input_dim), jnp.float32)
    out2 = jax.block_until_ready(model(x2))
    assert out2.shape == (13, embedding_dim)
    assert jnp.allclose(out2, _reference(x2, w1, b1, w2, b2), atol=1e-3, rtol=1e-3), \
        "ragged-batch mismatch vs bf16-matched reference"

    # Case 3: multi-tile ragged batch -> masked partial last block, no wrapper pad.
    x3 = jax.random.normal(kx3, (300, input_dim), jnp.float32)
    out3 = jax.block_until_ready(model(x3))
    assert out3.shape == (300, embedding_dim)
    assert jnp.allclose(out3, _reference(x3, w1, b1, w2, b2), atol=1e-3, rtol=1e-3), \
        "multi-tile mismatch vs bf16-matched reference"

    # Loose sanity check vs the pure-f32 forward (bf16 MXU rounding only).
    ref_f32 = jnp.maximum(x @ w1 + b1, 0.0) @ w2 + b2
    assert jnp.allclose(out, ref_f32, atol=5e-2, rtol=5e-2), \
        "semantics drifted from f32 reference"

    print("KERNEL_OK")
</pallas_src>

<mosaic_0001>
module attributes {stable_mosaic.version = 11 : i64} {
  func.func @copy_k(%arg0: i32, %arg1: memref<8x128xf32, #tpu.memory_space<vmem>>, %arg2: memref<8x128xf32, #tpu.memory_space<vmem>>) attributes {dimension_semantics = [#tpu.dimension_semantics<arbitrary>], iteration_bounds = array<i64: 2>, scalar_prefetch = 0 : i64, scratch_operands = 0 : i64, tpu.core_type = #tpu.core_type<tc>, window_params = [{pipeline_mode = #tpu.pipeline_mode<synchronous>, transform_indices = @transform_0, window_bounds = array<i64: 8, 128>}, {transform_indices = @transform_1, window_bounds = array<i64: 8, 128>}]} {
    %c0 = arith.constant 0 : index
    %c0_0 = arith.constant 0 : index
    %0 = vector.load %arg1[%c0, %c0_0] : memref<8x128xf32, #tpu.memory_space<vmem>>, vector<8x128xf32>
    %c0_1 = arith.constant 0 : index
    %c0_2 = arith.constant 0 : index
    %1 = vector.load %arg2[%c0_1, %c0_2] : memref<8x128xf32, #tpu.memory_space<vmem>>, vector<8x128xf32>
    tpu.vector_store %arg2[%c0_1, %c0_2], %0 {strides = array<i32>} : memref<8x128xf32, #tpu.memory_space<vmem>>, vector<8x128xf32>,
    return
  }
  func.func @transform_0(%arg0: i32) -> (i32, i32) {
    %c0_i32 = arith.constant 0 : i32
    %c0_i32_0 = arith.constant 0 : i32
    %c0_i32_1 = arith.constant 0 : i32
    return %c0_i32, %c0_i32_0 : i32, i32
  }
  func.func @transform_1(%arg0: i32) -> (i32, i32) {
    %c0_i32 = arith.constant 0 : i32
    %c0_i32_0 = arith.constant 0 : i32
    return %arg0, %c0_i32 : i32, i32
  }
}

module attributes {stable_mosaic.version = 11 : i64} {
  func.func @_mlp_kernel(%arg0: i32, %arg1: memref<16x32xf32, #tpu.memory_space<vmem>>, %arg2: memref<32x128xbf16, #tpu.memory_space<vmem>>, %arg3: memref<1x128xf32, #tpu.memory_space<vmem>>, %arg4: memref<128x128xbf16, #tpu.memory_space<vmem>>, %arg5: memref<1x128xf32, #tpu.memory_space<vmem>>, %arg6: memref<16x128xf32, #tpu.memory_space<vmem>>) attributes {dimension_semantics = [#tpu.dimension_semantics<parallel>], iteration_bounds = array<i64: 1>, scalar_prefetch = 0 : i64, scratch_operands = 0 : i64, tpu.core_type = #tpu.core_type<tc>, window_params = [{transform_indices = @transform_0, window_bounds = array<i64: 16, 32>}, {pipeline_mode = #tpu.pipeline_mode<synchronous>, transform_indices = @transform_1, window_bounds = array<i64: 32, 128>}, {pipeline_mode = #tpu.pipeline_mode<synchronous>, transform_indices = @transform_2, window_bounds = array<i64: 1, 128>}, {pipeline_mode = #tpu.pipeline_mode<synchronous>, transform_indices = @transform_3, window_bounds = array<i64: 128, 128>}, {pipeline_mode = #tpu.pipeline_mode<synchronous>, transform_indices = @transform_4, window_bounds = array<i64: 1, 128>}, {transform_indices = @transform_5, window_bounds = array<i64: 16, 128>}]} {
    %c0 = arith.constant 0 : index
    %c0_0 = arith.constant 0 : index
    %0 = vector.load %arg1[%c0, %c0_0] : memref<16x32xf32, #tpu.memory_space<vmem>>, vector<16x32xf32>
    %1 = arith.truncf %0 : vector<16x32xf32> to vector<16x32xbf16>
    %c0_1 = arith.constant 0 : index
    %c0_2 = arith.constant 0 : index
    %2 = vector.load %arg2[%c0_1, %c0_2] : memref<32x128xbf16, #tpu.memory_space<vmem>>, vector<32x128xbf16>
    %cst = arith.constant dense<0.000000e+00> : vector<16x128xf32>
    %3 = tpu.matmul %1, %2, %cst {dimension_numbers = #tpu.dot_dimension_numbers<[1], [0], [0], [1], [0, 0, 1, 1], [], []>} : vector<16x32xbf16>, vector<32x128xbf16>, vector<16x128xf32> -> vector<16x128xf32>
    %c0_3 = arith.constant 0 : index
    %c0_4 = arith.constant 0 : index
    %4 = vector.load %arg3[%c0_3, %c0_4] : memref<1x128xf32, #tpu.memory_space<vmem>>, vector<1x128xf32>
    %5 = vector.broadcast %4 : vector<1x128xf32> to vector<16x128xf32>
    %6 = arith.addf %3, %5 : vector<16x128xf32>
    %cst_5 = arith.constant 0.000000e+00 : f32
    %7 = vector.broadcast %cst_5 : f32 to vector<16x128xf32>
    %8 = arith.maximumf %6, %7 : vector<16x128xf32>
    %9 = arith.truncf %8 : vector<16x128xf32> to vector<16x128xbf16>
    %c0_6 = arith.constant 0 : index
    %c0_7 = arith.constant 0 : index
    %10 = vector.load %arg4[%c0_6, %c0_7] : memref<128x128xbf16, #tpu.memory_space<vmem>>, vector<128x128xbf16>
    %cst_8 = arith.constant dense<0.000000e+00> : vector<16x128xf32>
    %11 = tpu.matmul %9, %10, %cst_8 {dimension_numbers = #tpu.dot_dimension_numbers<[1], [0], [0], [1], [0, 0, 1, 1], [], []>} : vector<16x128xbf16>, vector<128x128xbf16>, vector<16x128xf32> -> vector<16x128xf32>
    %c0_9 = arith.constant 0 : index
    %c0_10 = arith.constant 0 : index
    %12 = vector.load %arg5[%c0_9, %c0_10] : memref<1x128xf32, #tpu.memory_space<vmem>>, vector<1x128xf32>
    %13 = vector.broadcast %12 : vector<1x128xf32> to vector<16x128xf32>
    %14 = arith.addf %11, %13 : vector<16x128xf32>
    %c0_11 = arith.constant 0 : index
    %c0_12 = arith.constant 0 : index
    %15 = vector.load %arg6[%c0_11, %c0_12] : memref<16x128xf32, #tpu.memory_space<vmem>>, vector<16x128xf32>
    tpu.vector_store %arg6[%c0_11, %c0_12], %14 {strides = array<i32>} : memref<16x128xf32, #tpu.memory_space<vmem>>, vector<16x128xf32>,
    return
  }
  func.func @transform_0(%arg0: i32) -> (i32, i32) {
    %c0_i32 = arith.constant 0 : i32
    %c0_i32_0 = arith.constant 0 : i32
    return %arg0, %c0_i32 : i32, i32
  }
  func.func @transform_1(%arg0: i32) -> (i32, i32) {
    %c0_i32 = arith.constant 0 : i32
    %c0_i32_0 = arith.constant 0 : i32
    %c0_i32_1 = arith.constant 0 : i32
    return %c0_i32, %c0_i32_0 : i32, i32
  }
  func.func @transform_2(%arg0: i32) -> (i32, i32) {
    %c0_i32 = arith.constant 0 : i32
    %c0_i32_0 = arith.constant 0 : i32
    %c0_i32_1 = arith.constant 0 : i32
    return %c0_i32, %c0_i32_0 : i32, i32
  }
  func.func @transform_3(%arg0: i32) -> (i32, i32) {
    %c0_i32 = arith.constant 0 : i32
    %c0_i32_0 = arith.constant 0 : i32
    %c0_i32_1 = arith.constant 0 : i32
    return %c0_i32, %c0_i32_0 : i32, i32
  }
  func.func @transform_4(%arg0: i32) -> (i32, i32) {
    %c0_i32 = arith.constant 0 : i32
    %c0_i32_0 = arith.constant 0 : i32
    %c0_i32_1 = arith.constant 0 : i32
    return %c0_i32, %c0_i32_0 : i32, i32
  }
  func.func @transform_5(%arg0: i32) -> (i32, i32) {
    %c0_i32 = arith.constant 0 : i32
    %c0_i32_0 = arith.constant 0 : i32
    return %arg0, %c0_i32 : i32, i32
  }
}

</mosaic_0001>

<llo_original>
// kernel: tpu_custom_call.1
$region0: #{tpu_custom_call.1}
  #allocation0 [shape = 'u32[]', space=smem, size = 0x4, offset = 0x4, fixed_abs, tag = 'smem constant byte address 0x4 - core index']
  #allocation1 [shape = 'u32[72,128]{1,0:T(1,128)}', space=vmem, size = 0x9000, scoped, tag = 'internal scratch']
  %s0 = inlined_call_operand.hbm [shape: f32[8,128], index: 0, kind: input, shape index: {}]
  %s1 = inlined_call_operand.hbm [shape: f32[16,128], index: 1, kind: output, shape index: {}]
  %s2 = sld [smem:[#allocation0]]
  $region41: #{tpu_custom_call.1} parent=0
    _
  %s4 = ssub.s32 1, %s2
  %s5 = scalar_select 0, %s4, %s2
  $region1: #{tpu_custom_call.1} parent=0
    #allocation2 [shape = 'u8[4096]{0}', space=vmem, size = 0x1000, scoped, tag = 'input window, operand 0, single buffered']
    #allocation3 [shape = 's32[2]{0}', space=sflag, size = 0x8, scoped, tag = 'scoped memory for tpu_custom_call.1']
    #allocation4 [shape = 's32[2]{0}', space=sflag, size = 0x8, scoped, tag = 'scoped memory for tpu_custom_call.1']
    #allocation5 [shape = 'u8[8192]{0}', space=vmem, size = 0x2000, scoped, tag = 'output window, operand 0']
    %6 = vsyncpa [#allocation3], 0
    %7 = vsyncpa [#allocation4], 0
    %s8 = scalar_lea.sflag [#allocation4], 1
    %9 = vsyncpa %s8, 0
    loop: start=0, step=1, limit=4
    $region2: #{tpu_custom_call.1} parent=1 // loop_pre_header
      _
    $region3: #{tpu_custom_call.1} parent=1 // loop_header
      %s11 = sphi 0, %s15
      %p12 = scmp.ge.s32.totalorder %s11, 4
      %s19 = sphi 0, %s19
      %s21 = sphi 0, %s19
      %s22 = sphi 0, %s21
      %s36 = sphi 0, %s22
      %s42 = sphi 0, %s44
      %s45 = sphi 0, %s42
      %s46 = sphi 0, %s45
      %s62 = sphi 0, %s46
    $region4: #{tpu_custom_call.1} parent=1 // loop_header_branch
      %14 = sbr.rel (%p12) target = $region8
    $region5: #{tpu_custom_call.1} parent=1 // loop_body
      %s16 = ssub.s32 %s11, 1
      %s17 = ssub.s32 %s11, 2
      %s18 = sadd.s32 %s11, 1
      %s20 = sadd.s32 %s19, 1
      %p23 = scmp.eq.s32.totalorder %s11, 1
      %p24 = scmp.ne.s32.totalorder %s19, %s21
      %p25 = scmp.eq.s32.totalorder %s11, 0
      %p26 = por %p24, %p25
      %p27 = scmp.ne.s32.totalorder %s19, %s21
      %p28 = scmp.eq.s32.totalorder %s16, 1
      %p29 = por %p27, %p28
      %p30 = scmp.ne.s32.totalorder %s21, %s22
      %p31 = scmp.eq.s32.totalorder %s16, 0
      %p32 = por %p30, %p31
      %p33 = scmp.ne.s32.totalorder %s21, %s22
      %p34 = scmp.eq.s32.totalorder %s17, 1
      %p35 = por %p33, %p34
      %p37 = scmp.ne.s32.totalorder %s22, %s36
      %p38 = scmp.eq.s32.totalorder %s17, 0
      %p39 = por %p37, %p38
      %s40 = ssub.s32 %s11, %s18
      %p41 = scmp.eq.s32.totalorder %s40, 0
      %s43 = sadd.s32 %s42, 1
      %s44 = scalar_select %p41, %s42, %s43
      %p47 = pneg %p41
      %p48 = scmp.eq.s32.totalorder %s11, 1
      %p49 = por %p47, %p48
      %p50 = scmp.ne.s32.totalorder %s42, %s45
      %p51 = scmp.eq.s32.totalorder %s11, 0
      %p52 = por %p50, %p51
      %p53 = scmp.ne.s32.totalorder %s42, %s45
      %p54 = scmp.eq.s32.totalorder %s16, 1
      %p55 = por %p53, %p54
      %p56 = scmp.ne.s32.totalorder %s45, %s46
      %p57 = scmp.eq.s32.totalorder %s16, 0
      %p58 = por %p56, %p57
      %p59 = scmp.ne.s32.totalorder %s45, %s46
      %p60 = scmp.eq.s32.totalorder %s17, 1
      %p61 = por %p59, %p60
      %p63 = scmp.ne.s32.totalorder %s46, %s62
      %p64 = scmp.eq.s32.totalorder %s17, 0
      %p65 = por %p63, %p64
      %p66 = scmp.le.s32.totalorder 1, %s11
      %p67 = scmp.lt.s32.totalorder %s11, 3
      %p68 = pnand %p66, %p67
      %p69 = pneg %p68
      // Predicated region
      $region9: #{tpu_custom_call.1} parent=5 // pred_check
        _
      $region10: #{tpu_custom_call.1} parent=5 // pred_check_branch
        %71 = sbr.rel (%p68) target = $region12
      $region11: #{tpu_custom_call.1} parent=5 // pred_region
        %s72 = ssub.s32 %s11, 1
        // Predicated region
        $region13: #{tpu_custom_call.1} parent=11 // pred_check
          %p73 = pneg %p32
        $region14: #{tpu_custom_call.1} parent=11 // pred_check_branch
          %75 = sbr.rel (%p73) target = $region16
        $region15: #{tpu_custom_call.1} parent=11 // pred_region
          %77 = vsyncadd [#allocation3], 0
          %s79 = sshll.u32 %s0, 4
          %s80 = int_to_ptr.hbm [resolvable:$true] %s79
          %s81 = sshll.u32 [#allocation2], 4
          %s82 = int_to_ptr.vmem [resolvable:$true] %s81
          %84 = dma.hbm_to_vmem [thread:$0]  %s80, 128, %s82, [#allocation3]
        $region16: #{tpu_custom_call.1} parent=11 // pred_fallthru
          _
      $region12: #{tpu_custom_call.1} parent=5 // pred_fallthru
        _
      %p85 = scmp.lt.s32.totalorder %s11, 2
      // Predicated region
      $region17: #{tpu_custom_call.1} parent=5 // pred_check
        %p86 = pneg %p85
      $region18: #{tpu_custom_call.1} parent=5 // pred_check_branch
        %88 = sbr.rel (%p86) target = $region20
      $region19: #{tpu_custom_call.1} parent=5 // pred_region
        _
      $region20: #{tpu_custom_call.1} parent=5 // pred_fallthru
        _
      %p89 = scmp.le.s32.totalorder 1, %s11
      %p90 = scmp.lt.s32.totalorder %s11, 3
      %p91 = pnand %p89, %p90
      %p92 = pneg %p91
      // Predicated region
      $region21: #{tpu_custom_call.1} parent=5 // pred_check
        _
      $region22: #{tpu_custom_call.1} parent=5 // pred_check_branch
        %94 = sbr.rel (%p91) target = $region24
      $region23: #{tpu_custom_call.1} parent=5 // pred_region
        %s95 = ssub.s32 %s11, 1
        // Predicated region
        $region25: #{tpu_custom_call.1} parent=23 // pred_check
          %p96 = pneg %p32
        $region26: #{tpu_custom_call.1} parent=23 // pred_check_branch
          %98 = sbr.rel (%p96) target = $region28
        $region27: #{tpu_custom_call.1} parent=23 // pred_region
          %100 = dma.done [#allocation3], 128
        $region28: #{tpu_custom_call.1} parent=23 // pred_fallthru
          _
        %p101 = pneg %p32
        %p102 = pneg %p29
        %p103 = pneg %p58
        %p104 = pneg %p55
        %s105 = sand.u32 %s45, 1
        %s106 = scalar_lea.sflag [#allocation4], %s105
        %s107 = sand.u32 %s45, 1
        %s108 = smul.addr %s107, 8
        %s109 = scalar_lea.vmem [#allocation5], %s108
        %v110 = vld [vmem:[#allocation2] sm:$0xff]
        %111 = vst [vmem:[%s109] sm:$0xff] %v110
        %s112 = sand.u32 %s45, 1
        %s113 = scalar_lea.sflag [#allocation4], %s112
        %s114 = sand.u32 %s45, 1
        %s115 = smul.addr %s114, 8
        %s116 = scalar_lea.vmem [#allocation5], %s115
        // Predicated region
        $region29: #{tpu_custom_call.1} parent=23 // pred_check
          %p117 = pneg %p55
        $region30: #{tpu_custom_call.1} parent=23 // pred_check_branch
          %119 = sbr.rel (%p117) target = $region32
        $region31: #{tpu_custom_call.1} parent=23 // pred_region
          %121 = vsyncadd %s113, 0
          %s122 = smul.addr %s16, 8
          %s123 = scalar_lea.hbm %s1, %s122
          %s125 = sshll.u32 %s116, 4
          %s126 = int_to_ptr.vmem [resolvable:$true] %s125
          %s127 = sshll.u32 %s123, 4
          %s128 = int_to_ptr.hbm [resolvable:$true] %s127
          %130 = dma.vmem_to_hbm [thread:$0]  %s126, 128, %s128, %s113
        $region32: #{tpu_custom_call.1} parent=23 // pred_fallthru
          _
      $region24: #{tpu_custom_call.1} parent=5 // pred_fallthru
        _
      %p131 = scmp.le.s32.totalorder 2, %s11
      // Predicated region
      $region33: #{tpu_custom_call.1} parent=5 // pred_check
        %p132 = pneg %p131
      $region34: #{tpu_custom_call.1} parent=5 // pred_check_branch
        %134 = sbr.rel (%p132) target = $region36
      $region35: #{tpu_custom_call.1} parent=5 // pred_region
        %s135 = ssub.s32 %s11, 2
        // Predicated region
        $region37: #{tpu_custom_call.1} parent=35 // pred_check
          %p136 = pneg %p61
        $region38: #{tpu_custom_call.1} parent=35 // pred_check_branch
          %138 = sbr.rel (%p136) target = $region40
        $region39: #{tpu_custom_call.1} parent=35 // pred_region
          %s139 = sand.u32 %s46, 1
          %s140 = scalar_lea.sflag [#allocation4], %s139
          %s141 = sand.u32 %s46, 1
          %s142 = smul.addr %s141, 8
          %s143 = scalar_lea.vmem [#allocation5], %s142
          %145 = dma.done %s140, 128
        $region40: #{tpu_custom_call.1} parent=35 // pred_fallthru
          _
      $region36: #{tpu_custom_call.1} parent=5 // pred_fallthru
        _
    $region6: #{tpu_custom_call.1} parent=1 // loop_footer
      %s15 = sadd.s32 1, %s11
    $region7: #{tpu_custom_call.1} parent=1 // loop_footer_branch
      %10 = sbr.rel target = $region3
    $region8: #{tpu_custom_call.1} parent=1 // loop_exit
      _
    %146 = vsyncpa [#allocation3], 1
    %s147 = scalar_lea.sflag [#allocation3], 1
    %148 = vsyncpa %s147, 1
    %149 = vsyncpa [#allocation4], 1
    %s150 = scalar_lea.sflag [#allocation4], 1
    %151 = vsyncpa %s150, 1

// kernel: _mlp_forward.1
$region0: #{_mlp_forward.1}
  #allocation0 [shape = 'u32[]', space=smem, size = 0x4, offset = 0x4, fixed_abs, tag = 'smem constant byte address 0x4 - core index']
  #allocation1 [shape = 'u32[72,128]{1,0:T(1,128)}', space=vmem, size = 0x9000, scoped, tag = 'internal scratch']
  %s0 = inlined_call_operand.vmem [shape: f32[16,32], index: 0, kind: input, shape index: {}]
  %s1 = inlined_call_operand.vmem [shape: bf16[32,128], index: 1, kind: input, shape index: {}]
  %s2 = inlined_call_operand.vmem [shape: f32[1,128], index: 2, kind: input, shape index: {}]
  %s3 = inlined_call_operand.hbm [shape: bf16[128,128], index: 3, kind: input, shape index: {}]
  %s4 = inlined_call_operand.vmem [shape: f32[1,128], index: 4, kind: input, shape index: {}]
  %s5 = inlined_call_operand.vmem [shape: f32[16,128], index: 5, kind: output, shape index: {}]
  %s6 = sld [smem:[#allocation0]]
  $region34: #{_mlp_forward.1} parent=0
    _
  %s8 = ssub.s32 1, %s6
  %s9 = scalar_select 0, %s8, %s6
  $region1: #{_mlp_forward.1} parent=0
    #allocation2 [shape = 'u8[32768]{0}', space=vmem, size = 0x8000, scoped, tag = 'input window, operand 3, single buffered']
    #allocation3 [shape = 's32[1]{0}', space=sflag, size = 0x4, scoped, tag = 'scoped memory for _mlp_forward.1']
    %10 = vsyncpa [#allocation3], 0
    // Predicated region
    $region2: #{_mlp_forward.1} parent=1 // pred_check
      _
    $region3: #{_mlp_forward.1} parent=1 // pred_check_branch
      %12 = sbr.rel (0) target = $region5
    $region4: #{_mlp_forward.1} parent=1 // pred_region
      _
    $region5: #{_mlp_forward.1} parent=1 // pred_fallthru
      _
    // Predicated region
    $region6: #{_mlp_forward.1} parent=1 // pred_check
      _
    $region7: #{_mlp_forward.1} parent=1 // pred_check_branch
      %14 = sbr.rel (0) target = $region9
    $region8: #{_mlp_forward.1} parent=1 // pred_region
      _
    $region9: #{_mlp_forward.1} parent=1 // pred_fallthru
      _
    // Predicated region
    $region10: #{_mlp_forward.1} parent=1 // pred_check
      _
    $region11: #{_mlp_forward.1} parent=1 // pred_check_branch
      %16 = sbr.rel (0) target = $region13
    $region12: #{_mlp_forward.1} parent=1 // pred_region
      _
    $region13: #{_mlp_forward.1} parent=1 // pred_fallthru
      _
    // Predicated region
    $region14: #{_mlp_forward.1} parent=1 // pred_check
      _
    $region15: #{_mlp_forward.1} parent=1 // pred_check_branch
      %18 = sbr.rel (0) target = $region17
    $region16: #{_mlp_forward.1} parent=1 // pred_region
      %20 = vsyncadd [#allocation3], 0
      %s21 = sshll.u32 %s3, 4
      %s22 = int_to_ptr.hbm [resolvable:$true] %s21
      %s23 = sshll.u32 [#allocation2], 4
      %s24 = int_to_ptr.vmem [resolvable:$true] %s23
      %29 = dma.hbm_to_vmem [thread:$0]  %s22, 1024, %s24, [#allocation3], 64, 64, 4
    $region17: #{_mlp_forward.1} parent=1 // pred_fallthru
      _
    // Predicated region
    $region18: #{_mlp_forward.1} parent=1 // pred_check
      _
    $region19: #{_mlp_forward.1} parent=1 // pred_check_branch
      %31 = sbr.rel (0) target = $region21
    $region20: #{_mlp_forward.1} parent=1 // pred_region
      _
    $region21: #{_mlp_forward.1} parent=1 // pred_fallthru
      _
    // Predicated region
    $region22: #{_mlp_forward.1} parent=1 // pred_check
      _
    $region23: #{_mlp_forward.1} parent=1 // pred_check_branch
      %33 = sbr.rel (0) target = $region25
    $region24: #{_mlp_forward.1} parent=1 // pred_region
      %35 = dma.done [#allocation3], 1024
    $region25: #{_mlp_forward.1} parent=1 // pred_fallthru
      _
    %v37 = vld [vmem:[%s0] sm:$0xff]
    %v38 = vld [vmem:[%s0 + $0x8] sm:$0xff]
    %v39 = vpack.c.bf16 %v38, %v37
    %v40 = vld [vmem:[%s1] sm:$0xf]
    %v41 = vld [vmem:[%s1 + $0x4] sm:$0xf]
    %v42 = vld [vmem:[%s1 + $0x8] sm:$0xf]
    %v43 = vld [vmem:[%s1 + $0xc] sm:$0xf]
    %v44 = vld [vmem:[%s2] sm:$0x1]
    %v46 = vperm.slane %v44, 0
    %v52 = vunpack.c.l.b16 %v40
    %v53 = vunpack.c.l.b16 %v41
    %v54 = vunpack.c.l.b16 %v42
    %v55 = vunpack.c.l.b16 %v43
    %v56 = vpack.c.b16 %v53, %v52
    %v57 = vpack.c.b16 %v55, %v54
    %vm60 = vcmask 261120
    %v62 = vsel %vm60, %v39, 0
    %64 = vmatpush.bf16.msra.mxu0 0
    %65 = vmatpush.bf16.msra.mxu0 0
    %66 = vmatpush.bf16.msra.mxu0 0
    %67 = vmatpush.bf16.msra.mxu0 0
    %68 = vmatpush.bf16.msra.mxu0 0
    %69 = vmatpush.bf16.msra.mxu0 0
    %70 = vmatpush.bf16.msra.mxu0 %v57
    %71 = vmatpush.bf16.msra.mxu0 %v56
    %72 = vmatmul.bf16.gmra.mxu0 %v62
    %v73 = vpop.f32.mrf.mxu0
    %v74 = vadd.f32 %v46, %v73
    %v75 = vpop.f32.mrf.mxu0
    %v76 = vadd.f32 %v46, %v75
    %77 = vdwg.mxu0
    %v78 = vmax.f32 %v74, 0.0
    %v79 = vmax.f32 %v76, 0.0
    %v80 = vpack.c.bf16 %v79, %v78
    %v81 = vld [vmem:[#allocation2] sm:$0xf]
    %v82 = vld [vmem:[#allocation2 + $0x4] sm:$0xf]
    %v83 = vld [vmem:[#allocation2 + $0x8] sm:$0xf]
    %v84 = vld [vmem:[#allocation2 + $0xc] sm:$0xf]
    %v85 = vld [vmem:[#allocation2 + $0x10] sm:$0xf]
    %v86 = vld [vmem:[#allocation2 + $0x14] sm:$0xf]
    %v87 = vld [vmem:[#allocation2 + $0x18] sm:$0xf]
    %v88 = vld [vmem:[#allocation2 + $0x1c] sm:$0xf]
    %v89 = vld [vmem:[#allocation2 + $0x20] sm:$0xf]
    %v90 = vld [vmem:[#allocation2 + $0x24] sm:$0xf]
    %v91 = vld [vmem:[#allocation2 + $0x28] sm:$0xf]
    %v92 = vld [vmem:[#allocation2 + $0x2c] sm:$0xf]
    %v93 = vld [vmem:[#allocation2 + $0x30] sm:$0xf]
    %v94 = vld [vmem:[#allocation2 + $0x34] sm:$0xf]
    %v95 = vld [vmem:[#allocation2 + $0x38] sm:$0xf]
    %v96 = vld [vmem:[#allocation2 + $0x3c] sm:$0xf]
    %v97 = vld [vmem:[%s4] sm:$0x1]
    %v99 = vperm.slane %v97, 0
    %v117 = vunpack.c.l.b16 %v81
    %v118 = vunpack.c.l.b16 %v82
    %v119 = vunpack.c.l.b16 %v83
    %v120 = vunpack.c.l.b16 %v84
    %v121 = vunpack.c.l.b16 %v85
    %v122 = vunpack.c.l.b16 %v86
    %v123 = vunpack.c.l.b16 %v87
    %v124 = vunpack.c.l.b16 %v88
    %v125 = vunpack.c.l.b16 %v89
    %v126 = vunpack.c.l.b16 %v90
    %v127 = vunpack.c.l.b16 %v91
    %v128 = vunpack.c.l.b16 %v92
    %v129 = vunpack.c.l.b16 %v93
    %v130 = vunpack.c.l.b16 %v94
    %v131 = vunpack.c.l.b16 %v95
    %v132 = vunpack.c.l.b16 %v96
    %v133 = vpack.c.b16 %v118, %v117
    %v134 = vpack.c.b16 %v120, %v119
    %v135 = vpack.c.b16 %v122, %v121
    %v136 = vpack.c.b16 %v124, %v123
    %v137 = vpack.c.b16 %v126, %v125
    %v138 = vpack.c.b16 %v128, %v127
    %v139 = vpack.c.b16 %v130, %v129
    %v140 = vpack.c.b16 %v132, %v131
    %149 = vmatpush.bf16.msra.mxu0 %v140
    %150 = vmatpush.bf16.msra.mxu0 %v139
    %151 = vmatpush.bf16.msra.mxu0 %v138
    %152 = vmatpush.bf16.msra.mxu0 %v137
    %153 = vmatpush.bf16.msra.mxu0 %v136
    %154 = vmatpush.bf16.msra.mxu0 %v135
    %155 = vmatpush.bf16.msra.mxu0 %v134
    %156 = vmatpush.bf16.msra.mxu0 %v133
    %157 = vmatmul.bf16.gmra.mxu0 %v80
    %v158 = vpop.f32.mrf.mxu0
    %v159 = vadd.f32 %v99, %v158
    %v160 = vpop.f32.mrf.mxu0
    %v161 = vadd.f32 %v99, %v160
    %162 = vdwg.mxu0
    %163 = vst [vmem:[%s5] sm:$0xff] %v159
    %164 = vst [vmem:[%s5 + $0x8] sm:$0xff] %v161
    // Predicated region
    $region26: #{_mlp_forward.1} parent=1 // pred_check
      _
    $region27: #{_mlp_forward.1} parent=1 // pred_check_branch
      %166 = sbr.rel (0) target = $region29
    $region28: #{_mlp_forward.1} parent=1 // pred_region
      _
    $region29: #{_mlp_forward.1} parent=1 // pred_fallthru
      _
    // Predicated region
    $region30: #{_mlp_forward.1} parent=1 // pred_check
      _
    $region31: #{_mlp_forward.1} parent=1 // pred_check_branch
      %168 = sbr.rel (0) target = $region33
    $region32: #{_mlp_forward.1} parent=1 // pred_region
      _
    $region33: #{_mlp_forward.1} parent=1 // pred_fallthru
      _
    %169 = vsyncpa [#allocation3], 1

</llo_original>
